<compile_context>
chip_gen: v5e
topology: v5e:2x2
jax: 0.10.0
libtpu: 0.0.40
codegen_flags: <defaults>
</compile_context>

<pallas_src>
import functools

import jax
import jax.numpy as jnp
from jax.experimental import pallas as pl
from jax.experimental.pallas import tpu as pltpu

HIDDEN = 256
NUM_CLASSES = 3
PADDED_CLASSES = 128   # lane-dense class axis for the final matmul
OUT_LANES = 8          # narrow stored output (only lanes 0..2 meaningful)


def mdh_kernel(x_ref, w1_ref, b1_ref, w2_ref, b2_ref, w4_ref, b4_ref, o_ref):
    """One row-tile of the MLP head + masked log-softmax.

    x_ref : (tm, D)   f32  (cast to bf16 here, not in the wrapper)
    w1    : (D, 256)   bf16        b1: (1, 256)  f32
    w2    : (256, 256) bf16        b2: (1, 256)  f32
    w4    : (256, 128) bf16 (cols 3..127 zero)   b4: (1, 128) f32 (cols 3.. zero)
    o_ref : (tm, 8)    f32  (only lanes 0..2 meaningful)
    """
    x = x_ref[...].astype(jnp.bfloat16)

    # linear1 + relu   (dropout == identity in eval)
    h1 = jnp.dot(x, w1_ref[...], preferred_element_type=jnp.float32) + b1_ref[...]
    h1 = jnp.maximum(h1, 0.0).astype(jnp.bfloat16)

    # linear2 + relu
    h2 = jnp.dot(h1, w2_ref[...], preferred_element_type=jnp.float32) + b2_ref[...]
    h2 = jnp.maximum(h2, 0.0).astype(jnp.bfloat16)

    # linear4 (classes padded to 128 lanes) + relu
    z = jnp.dot(h2, w4_ref[...], preferred_element_type=jnp.float32) + b4_ref[...]
    z = jnp.maximum(z, 0.0)

    # mask the padded class lanes so they cannot affect max / log-sum-exp
    col = jax.lax.broadcasted_iota(jnp.int32, z.shape, 1)
    z = jnp.where(col < NUM_CLASSES, z, -jnp.inf)

    # log-softmax over the (real) class lanes
    m = jnp.max(z, axis=-1, keepdims=True)
    zs = z - m
    lse = jnp.log(jnp.sum(jnp.exp(zs), axis=-1, keepdims=True))

    # narrow writeback: only the first 8 lanes are stored to HBM
    o_ref[...] = (zs - lse)[:, :OUT_LANES].astype(o_ref.dtype)


def _round_up(n, m):
    return ((n + m - 1) // m) * m


def _cdiv(a, b):
    return (a + b - 1) // b


@functools.partial(jax.jit, static_argnames=("tm",))
def mention_detection_head(x, w1, b1, w2, b2, w4, b4, *, tm=512):
    """x: (B, S, D) float32 -> (B, S, 3) float32 log-probs."""
    B, S, D = x.shape
    rows = B * S

    # Row tile: at most `tm`, at least 8, and small enough that the grid has
    # >= 2 steps when rows allow it (keeps both v7x TensorCores busy).
    tm_eff = min(tm, max(8, _round_up(_cdiv(rows, 2), 8)))
    grid_m = _cdiv(rows, tm_eff)   # ragged last block handled by Pallas

    x2d = x.reshape(rows, D)       # stays f32; cast happens inside the kernel

    # bf16 weights for the MXU (cast once here, not per grid step)
    w1_bf = w1.astype(jnp.bfloat16)
    w2_bf = w2.astype(jnp.bfloat16)
    # pad the class dim 3 -> 128 so the last matmul is lane-dense on the MXU
    w4_p = jnp.zeros((HIDDEN, PADDED_CLASSES), jnp.bfloat16)
    w4_p = w4_p.at[:, :NUM_CLASSES].set(w4.astype(jnp.bfloat16))
    b4_p = jnp.zeros((1, PADDED_CLASSES), jnp.float32)
    b4_p = b4_p.at[:, :NUM_CLASSES].set(b4.astype(jnp.float32))

    # biases kept f32 as (1, N) so they broadcast inside the kernel
    b1_2d = b1.reshape(1, HIDDEN).astype(jnp.float32)
    b2_2d = b2.reshape(1, HIDDEN).astype(jnp.float32)

    full = lambda i: (0, 0)  # weights/biases: same whole-array block every step

    # explicit VMEM budget (double-buffered tiles + resident weights), with
    # headroom, floored at 16 MiB and capped below v7x's 64 MiB physical VMEM.
    vmem_need = (
        2 * tm_eff * D * 4                                            # x tiles (f32)
        + 2 * (D * HIDDEN + HIDDEN * HIDDEN + HIDDEN * PADDED_CLASSES) * 2  # weights
        + 2 * (2 * HIDDEN + PADDED_CLASSES) * 4                       # biases
        + 2 * tm_eff * OUT_LANES * 4                                   # output tiles
        + 3 * tm_eff * HIDDEN * 4                                      # live activations
    )
    vmem_limit = int(min(max(2 * vmem_need, 16 * 1024 * 1024), 60 * 1024 * 1024))

    flops = 2 * rows * (D * HIDDEN + HIDDEN * HIDDEN + HIDDEN * PADDED_CLASSES)
    transcendentals = rows * (PADDED_CLASSES + 1)   # exp + log per row
    bytes_accessed = (
        rows * D * 4                                                   # x (f32)
        + (D * HIDDEN + HIDDEN * HIDDEN + HIDDEN * PADDED_CLASSES) * 2  # weights (bf16)
        + (2 * HIDDEN + PADDED_CLASSES) * 4                            # biases (f32)
        + rows * OUT_LANES * 4                                         # output (f32)
    )

    out2d = pl.pallas_call(
        mdh_kernel,
        out_shape=jax.ShapeDtypeStruct((rows, OUT_LANES), jnp.float32),
        grid_spec=pltpu.PrefetchScalarGridSpec(
            num_scalar_prefetch=0,
            grid=(grid_m,),
            in_specs=[
                pl.BlockSpec((tm_eff, D), lambda i: (i, 0)),          # x row tile
                pl.BlockSpec((D, HIDDEN), full),                       # W1
                pl.BlockSpec((1, HIDDEN), full),                       # b1
                pl.BlockSpec((HIDDEN, HIDDEN), full),                  # W2
                pl.BlockSpec((1, HIDDEN), full),                       # b2
                pl.BlockSpec((HIDDEN, PADDED_CLASSES), full),          # W4 (padded)
                pl.BlockSpec((1, PADDED_CLASSES), full),               # b4 (padded)
            ],
            out_specs=pl.BlockSpec((tm_eff, OUT_LANES), lambda i: (i, 0)),
        ),
        compiler_params=pltpu.CompilerParams(
            dimension_semantics=("parallel",),
            vmem_limit_bytes=vmem_limit),
        cost_estimate=pl.CostEstimate(
            flops=flops,
            transcendentals=transcendentals,
            bytes_accessed=bytes_accessed),
    )(x2d, w1_bf, b1_2d, w2_bf, b2_2d, w4_p, b4_p)

    return out2d[:, :NUM_CLASSES].reshape(B, S, NUM_CLASSES)


def _init_params(key, input_dim):
    """Deterministic synthetic parameters matching nn.Linear shapes.

    PyTorch stores Linear weight as (out, in); we keep the (in, out) layout
    directly since we generate weights ourselves.
    """
    k1, k2, k3, k4, k5, k6 = jax.random.split(key, 6)
    w1 = jax.random.normal(k1, (input_dim, HIDDEN), jnp.float32) * 0.05
    b1 = jax.random.normal(k2, (HIDDEN,), jnp.float32) * 0.05
    w2 = jax.random.normal(k3, (HIDDEN, HIDDEN), jnp.float32) * 0.05
    b2 = jax.random.normal(k4, (HIDDEN,), jnp.float32) * 0.05
    w4 = jax.random.normal(k5, (HIDDEN, NUM_CLASSES), jnp.float32) * 0.05
    b4 = jax.random.normal(k6, (NUM_CLASSES,), jnp.float32) * 0.05
    return w1, b1, w2, b2, w4, b4


def _reference(x, w1, b1, w2, b2, w4, b4):
    h1 = jax.nn.relu(x @ w1 + b1)
    h2 = jax.nn.relu(h1 @ w2 + b2)
    z = jax.nn.relu(h2 @ w4 + b4)
    return jax.nn.log_softmax(z, axis=2)


if __name__ == "__main__":
    key = jax.random.PRNGKey(0)
    kx, kp, kx2 = jax.random.split(key, 3)

    # small demo shapes (batch, seq, BERT hidden)
    B, S, D = 2, 8, 32
    x = jax.random.normal(kx, (B, S, D), jnp.float32)
    params = _init_params(kp, D)

    out = mention_detection_head(x, *params)
    out = jax.block_until_ready(out)
    ref = _reference(x, *params)
    assert out.shape == (B, S, NUM_CLASSES)
    # bf16 matmuls + f32 accumulation -> relaxed tolerance vs pure-f32 reference
    assert jnp.allclose(out, ref, atol=2e-2, rtol=2e-2), "mismatch vs reference"

    # second case exercising the ragged-grid path (rows not a multiple of the tile)
    B2, S2 = 3, 5
    x2 = jax.random.normal(kx2, (B2, S2, D), jnp.float32)
    out2 = jax.block_until_ready(mention_detection_head(x2, *params))
    ref2 = _reference(x2, *params)
    assert out2.shape == (B2, S2, NUM_CLASSES)
    assert jnp.allclose(out2, ref2, atol=2e-2, rtol=2e-2), "mismatch (ragged rows)"

    print("KERNEL_OK")
</pallas_src>

<mosaic_0001>
module attributes {stable_mosaic.version = 11 : i64} {
  func.func @mdh_kernel(%arg0: i32, %arg1: memref<8x32xf32, #tpu.memory_space<vmem>>, %arg2: memref<32x256xbf16, #tpu.memory_space<vmem>>, %arg3: memref<1x256xf32, #tpu.memory_space<vmem>>, %arg4: memref<256x256xbf16, #tpu.memory_space<vmem>>, %arg5: memref<1x256xf32, #tpu.memory_space<vmem>>, %arg6: memref<256x128xbf16, #tpu.memory_space<vmem>>, %arg7: memref<1x128xf32, #tpu.memory_space<vmem>>, %arg8: memref<8x8xf32, #tpu.memory_space<vmem>>) attributes {dimension_semantics = [#tpu.dimension_semantics<parallel>], iteration_bounds = array<i64: 2>, scalar_prefetch = 0 : i64, scratch_operands = 0 : i64, tpu.core_type = #tpu.core_type<tc>, window_params = [{transform_indices = @transform_0, window_bounds = array<i64: 8, 32>}, {pipeline_mode = #tpu.pipeline_mode<synchronous>, transform_indices = @transform_1, window_bounds = array<i64: 32, 256>}, {pipeline_mode = #tpu.pipeline_mode<synchronous>, transform_indices = @transform_2, window_bounds = array<i64: 1, 256>}, {pipeline_mode = #tpu.pipeline_mode<synchronous>, transform_indices = @transform_3, window_bounds = array<i64: 256, 256>}, {pipeline_mode = #tpu.pipeline_mode<synchronous>, transform_indices = @transform_4, window_bounds = array<i64: 1, 256>}, {pipeline_mode = #tpu.pipeline_mode<synchronous>, transform_indices = @transform_5, window_bounds = array<i64: 256, 128>}, {pipeline_mode = #tpu.pipeline_mode<synchronous>, transform_indices = @transform_6, window_bounds = array<i64: 1, 128>}, {transform_indices = @transform_7, window_bounds = array<i64: 8, 8>}]} {
    %c0 = arith.constant 0 : index
    %c0_0 = arith.constant 0 : index
    %0 = vector.load %arg1[%c0, %c0_0] : memref<8x32xf32, #tpu.memory_space<vmem>>, vector<8x32xf32>
    %1 = arith.truncf %0 : vector<8x32xf32> to vector<8x32xbf16>
    %c0_1 = arith.constant 0 : index
    %c0_2 = arith.constant 0 : index
    %2 = vector.load %arg2[%c0_1, %c0_2] : memref<32x256xbf16, #tpu.memory_space<vmem>>, vector<32x256xbf16>
    %cst = arith.constant dense<0.000000e+00> : vector<8x256xf32>
    %3 = tpu.matmul %1, %2, %cst {dimension_numbers = #tpu.dot_dimension_numbers<[1], [0], [0], [1], [0, 0, 1, 1], [], []>} : vector<8x32xbf16>, vector<32x256xbf16>, vector<8x256xf32> -> vector<8x256xf32>
    %c0_3 = arith.constant 0 : index
    %c0_4 = arith.constant 0 : index
    %4 = vector.load %arg3[%c0_3, %c0_4] : memref<1x256xf32, #tpu.memory_space<vmem>>, vector<1x256xf32>
    %5 = vector.broadcast %4 : vector<1x256xf32> to vector<8x256xf32>
    %6 = arith.addf %3, %5 : vector<8x256xf32>
    %cst_5 = arith.constant 0.000000e+00 : f32
    %7 = vector.broadcast %cst_5 : f32 to vector<8x256xf32>
    %8 = arith.maximumf %6, %7 : vector<8x256xf32>
    %9 = arith.truncf %8 : vector<8x256xf32> to vector<8x256xbf16>
    %c0_6 = arith.constant 0 : index
    %c0_7 = arith.constant 0 : index
    %10 = vector.load %arg4[%c0_6, %c0_7] : memref<256x256xbf16, #tpu.memory_space<vmem>>, vector<256x256xbf16>
    %cst_8 = arith.constant dense<0.000000e+00> : vector<8x256xf32>
    %11 = tpu.matmul %9, %10, %cst_8 {dimension_numbers = #tpu.dot_dimension_numbers<[1], [0], [0], [1], [0, 0, 1, 1], [], []>} : vector<8x256xbf16>, vector<256x256xbf16>, vector<8x256xf32> -> vector<8x256xf32>
    %c0_9 = arith.constant 0 : index
    %c0_10 = arith.constant 0 : index
    %12 = vector.load %arg5[%c0_9, %c0_10] : memref<1x256xf32, #tpu.memory_space<vmem>>, vector<1x256xf32>
    %13 = vector.broadcast %12 : vector<1x256xf32> to vector<8x256xf32>
    %14 = arith.addf %11, %13 : vector<8x256xf32>
    %cst_11 = arith.constant 0.000000e+00 : f32
    %15 = vector.broadcast %cst_11 : f32 to vector<8x256xf32>
    %16 = arith.maximumf %14, %15 : vector<8x256xf32>
    %17 = arith.truncf %16 : vector<8x256xf32> to vector<8x256xbf16>
    %c0_12 = arith.constant 0 : index
    %c0_13 = arith.constant 0 : index
    %18 = vector.load %arg6[%c0_12, %c0_13] : memref<256x128xbf16, #tpu.memory_space<vmem>>, vector<256x128xbf16>
    %cst_14 = arith.constant dense<0.000000e+00> : vector<8x128xf32>
    %19 = tpu.matmul %17, %18, %cst_14 {dimension_numbers = #tpu.dot_dimension_numbers<[1], [0], [0], [1], [0, 0, 1, 1], [], []>} : vector<8x256xbf16>, vector<256x128xbf16>, vector<8x128xf32> -> vector<8x128xf32>
    %c0_15 = arith.constant 0 : index
    %c0_16 = arith.constant 0 : index
    %20 = vector.load %arg7[%c0_15, %c0_16] : memref<1x128xf32, #tpu.memory_space<vmem>>, vector<1x128xf32>
    %21 = vector.broadcast %20 : vector<1x128xf32> to vector<8x128xf32>
    %22 = arith.addf %19, %21 : vector<8x128xf32>
    %cst_17 = arith.constant 0.000000e+00 : f32
    %23 = vector.broadcast %cst_17 : f32 to vector<8x128xf32>
    %24 = arith.maximumf %22, %23 : vector<8x128xf32>
    %25 = tpu.iota {dimensions = array<i32: 1>} : vector<8x128xi32>
    %c3_i32 = arith.constant 3 : i32
    %26 = vector.broadcast %c3_i32 : i32 to vector<8x128xi32>
    %27 = arith.cmpi slt, %25, %26 : vector<8x128xi32>
    %cst_18 = arith.constant 0xFF800000 : f32
    %28 = vector.broadcast %cst_18 : f32 to vector<8x128xf32>
    %29 = arith.select %27, %24, %28 : vector<8x128xi1>, vector<8x128xf32>
    %cst_19 = arith.constant dense<0xFF800000> : vector<8xf32>
    %30 = vector.multi_reduction <maximumf>, %29, %cst_19 [1] : vector<8x128xf32> to vector<8xf32>
    %31 = vector.shape_cast %30 : vector<8xf32> to vector<8x1xf32>
    %32 = vector.broadcast %31 : vector<8x1xf32> to vector<8x128xf32>
    %33 = arith.subf %29, %32 : vector<8x128xf32>
    %34 = math.exp %33 : vector<8x128xf32>
    %cst_20 = arith.constant dense<0.000000e+00> : vector<8xf32>
    %35 = vector.multi_reduction <add>, %34, %cst_20 [1] : vector<8x128xf32> to vector<8xf32>
    %36 = vector.shape_cast %35 : vector<8xf32> to vector<8x1xf32>
    %37 = math.log %36 : vector<8x1xf32>
    %38 = vector.broadcast %37 : vector<8x1xf32> to vector<8x128xf32>
    %39 = arith.subf %33, %38 : vector<8x128xf32>
    %40 = vector.extract_strided_slice %39 {offsets = [0, 0], sizes = [8, 8], strides = [1, 1]} : vector<8x128xf32> to vector<8x8xf32>
    %c0_21 = arith.constant 0 : index
    %c0_22 = arith.constant 0 : index
    %41 = vector.load %arg8[%c0_21, %c0_22] : memref<8x8xf32, #tpu.memory_space<vmem>>, vector<8x8xf32>
    tpu.vector_store %arg8[%c0_21, %c0_22], %40 {strides = array<i32>} : memref<8x8xf32, #tpu.memory_space<vmem>>, vector<8x8xf32>,
    return
  }
  func.func @transform_0(%arg0: i32) -> (i32, i32) {
    %c0_i32 = arith.constant 0 : i32
    %c0_i32_0 = arith.constant 0 : i32
    return %arg0, %c0_i32 : i32, i32
  }
  func.func @transform_1(%arg0: i32) -> (i32, i32) {
    %c0_i32 = arith.constant 0 : i32
    %c0_i32_0 = arith.constant 0 : i32
    %c0_i32_1 = arith.constant 0 : i32
    return %c0_i32, %c0_i32_0 : i32, i32
  }
  func.func @transform_2(%arg0: i32) -> (i32, i32) {
    %c0_i32 = arith.constant 0 : i32
    %c0_i32_0 = arith.constant 0 : i32
    %c0_i32_1 = arith.constant 0 : i32
    return %c0_i32, %c0_i32_0 : i32, i32
  }
  func.func @transform_3(%arg0: i32) -> (i32, i32) {
    %c0_i32 = arith.constant 0 : i32
    %c0_i32_0 = arith.constant 0 : i32
    %c0_i32_1 = arith.constant 0 : i32
    return %c0_i32, %c0_i32_0 : i32, i32
  }
  func.func @transform_4(%arg0: i32) -> (i32, i32) {
    %c0_i32 = arith.constant 0 : i32
    %c0_i32_0 = arith.constant 0 : i32
    %c0_i32_1 = arith.constant 0 : i32
    return %c0_i32, %c0_i32_0 : i32, i32
  }
  func.func @transform_5(%arg0: i32) -> (i32, i32) {
    %c0_i32 = arith.constant 0 : i32
    %c0_i32_0 = arith.constant 0 : i32
    %c0_i32_1 = arith.constant 0 : i32
    return %c0_i32, %c0_i32_0 : i32, i32
  }
  func.func @transform_6(%arg0: i32) -> (i32, i32) {
    %c0_i32 = arith.constant 0 : i32
    %c0_i32_0 = arith.constant 0 : i32
    %c0_i32_1 = arith.constant 0 : i32
    return %c0_i32, %c0_i32_0 : i32, i32
  }
  func.func @transform_7(%arg0: i32) -> (i32, i32) {
    %c0_i32 = arith.constant 0 : i32
    %c0_i32_0 = arith.constant 0 : i32
    return %arg0, %c0_i32 : i32, i32
  }
}

</mosaic_0001>

<llo_original>
// kernel: mention_detection_head.1
$region0: #{mention_detection_head.1}
  #allocation0 [shape = 'u32[]', space=smem, size = 0x4, offset = 0x4, fixed_abs, tag = 'smem constant byte address 0x4 - core index']
  #allocation1 [shape = 'u32[72,128]{1,0:T(1,128)}', space=vmem, size = 0x9000, scoped, tag = 'internal scratch']
  %s0 = inlined_call_operand.vmem [shape: f32[16,32], index: 0, kind: input, shape index: {}]
  %s1 = inlined_call_operand.vmem [shape: bf16[32,256], index: 1, kind: input, shape index: {}]
  %s2 = inlined_call_operand.vmem [shape: f32[1,256], index: 2, kind: input, shape index: {}]
  %s3 = inlined_call_operand.vmem [shape: bf16[256,256], index: 3, kind: input, shape index: {}]
  %s4 = inlined_call_operand.vmem [shape: f32[1,256], index: 4, kind: input, shape index: {}]
  %s5 = inlined_call_operand.vmem [shape: bf16[256,128], index: 5, kind: input, shape index: {}]
  %s6 = inlined_call_operand.vmem [shape: f32[1,128], index: 6, kind: input, shape index: {}]
  %s7 = inlined_call_operand.vmem [shape: f32[16,8], index: 7, kind: output, shape index: {}]
  %s8 = sld [smem:[#allocation0]]
  $region61: #{mention_detection_head.1} parent=0
    _
  %s10 = ssub.s32 1, %s8
  %s11 = scalar_select 0, %s10, %s8
  loop: start=0, step=1, limit=4
  $region2: #{mention_detection_head.1} parent=0 // loop_pre_header
    _
  $region3: #{mention_detection_head.1} parent=0 // loop_header
    %s13 = sphi 0, %s17
    %p14 = scmp.ge.s32.totalorder %s13, 4
    %s23 = sphi 0, %s25
    %s26 = sphi 0, %s23
    %s27 = sphi 0, %s26
    %s43 = sphi 0, %s27
    %s47 = sphi 0, %s47
    %s49 = sphi 0, %s47
    %s50 = sphi 0, %s49
    %s64 = sphi 0, %s50
    %s68 = sphi 0, %s68
    %s70 = sphi 0, %s68
    %s71 = sphi 0, %s70
    %s85 = sphi 0, %s71
    %s89 = sphi 0, %s89
    %s91 = sphi 0, %s89
    %s92 = sphi 0, %s91
    %s106 = sphi 0, %s92
    %s110 = sphi 0, %s110
    %s112 = sphi 0, %s110
    %s113 = sphi 0, %s112
    %s127 = sphi 0, %s113
    %s131 = sphi 0, %s131
    %s133 = sphi 0, %s131
    %s134 = sphi 0, %s133
    %s148 = sphi 0, %s134
    %s152 = sphi 0, %s152
    %s154 = sphi 0, %s152
    %s155 = sphi 0, %s154
    %s169 = sphi 0, %s155
    %s175 = sphi 0, %s177
    %s178 = sphi 0, %s175
    %s179 = sphi 0, %s178
    %s195 = sphi 0, %s179
  $region4: #{mention_detection_head.1} parent=0 // loop_header_branch
    %16 = sbr.rel (%p14) target = $region8
  $region5: #{mention_detection_head.1} parent=0 // loop_body
    %s18 = ssub.s32 %s13, 1
    %s19 = ssub.s32 %s13, 2
    %s20 = sadd.s32 %s13, 1
    %s21 = ssub.s32 %s13, %s20
    %p22 = scmp.eq.s32.totalorder %s21, 0
    %s24 = sadd.s32 %s23, 1
    %s25 = scalar_select %p22, %s23, %s24
    %p28 = pneg %p22
    %p29 = scmp.eq.s32.totalorder %s13, 1
    %p30 = por %p28, %p29
    %p31 = scmp.ne.s32.totalorder %s23, %s26
    %p32 = scmp.eq.s32.totalorder %s13, 0
    %p33 = por %p31, %p32
    %p34 = scmp.ne.s32.totalorder %s23, %s26
    %p35 = scmp.eq.s32.totalorder %s18, 1
    %p36 = por %p34, %p35
    %p37 = scmp.ne.s32.totalorder %s26, %s27
    %p38 = scmp.eq.s32.totalorder %s18, 0
    %p39 = por %p37, %p38
    %p40 = scmp.ne.s32.totalorder %s26, %s27
    %p41 = scmp.eq.s32.totalorder %s19, 1
    %p42 = por %p40, %p41
    %p44 = scmp.ne.s32.totalorder %s27, %s43
    %p45 = scmp.eq.s32.totalorder %s19, 0
    %p46 = por %p44, %p45
    %s48 = sadd.s32 %s47, 1
    %p51 = scmp.eq.s32.totalorder %s13, 1
    %p52 = scmp.ne.s32.totalorder %s47, %s49
    %p53 = scmp.eq.s32.totalorder %s13, 0
    %p54 = por %p52, %p53
    %p55 = scmp.ne.s32.totalorder %s47, %s49
    %p56 = scmp.eq.s32.totalorder %s18, 1
    %p57 = por %p55, %p56
    %p58 = scmp.ne.s32.totalorder %s49, %s50
    %p59 = scmp.eq.s32.totalorder %s18, 0
    %p60 = por %p58, %p59
    %p61 = scmp.ne.s32.totalorder %s49, %s50
    %p62 = scmp.eq.s32.totalorder %s19, 1
    %p63 = por %p61, %p62
    %p65 = scmp.ne.s32.totalorder %s50, %s64
    %p66 = scmp.eq.s32.totalorder %s19, 0
    %p67 = por %p65, %p66
    %s69 = sadd.s32 %s68, 1
    %p72 = scmp.eq.s32.totalorder %s13, 1
    %p73 = scmp.ne.s32.totalorder %s68, %s70
    %p74 = scmp.eq.s32.totalorder %s13, 0
    %p75 = por %p73, %p74
    %p76 = scmp.ne.s32.totalorder %s68, %s70
    %p77 = scmp.eq.s32.totalorder %s18, 1
    %p78 = por %p76, %p77
    %p79 = scmp.ne.s32.totalorder %s70, %s71
    %p80 = scmp.eq.s32.totalorder %s18, 0
    %p81 = por %p79, %p80
    %p82 = scmp.ne.s32.totalorder %s70, %s71
    %p83 = scmp.eq.s32.totalorder %s19, 1
    %p84 = por %p82, %p83
    %p86 = scmp.ne.s32.totalorder %s71, %s85
    %p87 = scmp.eq.s32.totalorder %s19, 0
    %p88 = por %p86, %p87
    %s90 = sadd.s32 %s89, 1
    %p93 = scmp.eq.s32.totalorder %s13, 1
    %p94 = scmp.ne.s32.totalorder %s89, %s91
    %p95 = scmp.eq.s32.totalorder %s13, 0
    %p96 = por %p94, %p95
    %p97 = scmp.ne.s32.totalorder %s89, %s91
    %p98 = scmp.eq.s32.totalorder %s18, 1
    %p99 = por %p97, %p98
    %p100 = scmp.ne.s32.totalorder %s91, %s92
    %p101 = scmp.eq.s32.totalorder %s18, 0
    %p102 = por %p100, %p101
    %p103 = scmp.ne.s32.totalorder %s91, %s92
    %p104 = scmp.eq.s32.totalorder %s19, 1
    %p105 = por %p103, %p104
    %p107 = scmp.ne.s32.totalorder %s92, %s106
    %p108 = scmp.eq.s32.totalorder %s19, 0
    %p109 = por %p107, %p108
    %s111 = sadd.s32 %s110, 1
    %p114 = scmp.eq.s32.totalorder %s13, 1
    %p115 = scmp.ne.s32.totalorder %s110, %s112
    %p116 = scmp.eq.s32.totalorder %s13, 0
    %p117 = por %p115, %p116
    %p118 = scmp.ne.s32.totalorder %s110, %s112
    %p119 = scmp.eq.s32.totalorder %s18, 1
    %p120 = por %p118, %p119
    %p121 = scmp.ne.s32.totalorder %s112, %s113
    %p122 = scmp.eq.s32.totalorder %s18, 0
    %p123 = por %p121, %p122
    %p124 = scmp.ne.s32.totalorder %s112, %s113
    %p125 = scmp.eq.s32.totalorder %s19, 1
    %p126 = por %p124, %p125
    %p128 = scmp.ne.s32.totalorder %s113, %s127
    %p129 = scmp.eq.s32.totalorder %s19, 0
    %p130 = por %p128, %p129
    %s132 = sadd.s32 %s131, 1
    %p135 = scmp.eq.s32.totalorder %s13, 1
    %p136 = scmp.ne.s32.totalorder %s131, %s133
    %p137 = scmp.eq.s32.totalorder %s13, 0
    %p138 = por %p136, %p137
    %p139 = scmp.ne.s32.totalorder %s131, %s133
    %p140 = scmp.eq.s32.totalorder %s18, 1
    %p141 = por %p139, %p140
    %p142 = scmp.ne.s32.totalorder %s133, %s134
    %p143 = scmp.eq.s32.totalorder %s18, 0
    %p144 = por %p142, %p143
    %p145 = scmp.ne.s32.totalorder %s133, %s134
    %p146 = scmp.eq.s32.totalorder %s19, 1
    %p147 = por %p145, %p146
    %p149 = scmp.ne.s32.totalorder %s134, %s148
    %p150 = scmp.eq.s32.totalorder %s19, 0
    %p151 = por %p149, %p150
    %s153 = sadd.s32 %s152, 1
    %p156 = scmp.eq.s32.totalorder %s13, 1
    %p157 = scmp.ne.s32.totalorder %s152, %s154
    %p158 = scmp.eq.s32.totalorder %s13, 0
    %p159 = por %p157, %p158
    %p160 = scmp.ne.s32.totalorder %s152, %s154
    %p161 = scmp.eq.s32.totalorder %s18, 1
    %p162 = por %p160, %p161
    %p163 = scmp.ne.s32.totalorder %s154, %s155
    %p164 = scmp.eq.s32.totalorder %s18, 0
    %p165 = por %p163, %p164
    %p166 = scmp.ne.s32.totalorder %s154, %s155
    %p167 = scmp.eq.s32.totalorder %s19, 1
    %p168 = por %p166, %p167
    %p170 = scmp.ne.s32.totalorder %s155, %s169
    %p171 = scmp.eq.s32.totalorder %s19, 0
    %p172 = por %p170, %p171
    %s173 = ssub.s32 %s13, %s20
    %p174 = scmp.eq.s32.totalorder %s173, 0
    %s176 = sadd.s32 %s175, 1
    %s177 = scalar_select %p174, %s175, %s176
    %p180 = pneg %p174
    %p181 = scmp.eq.s32.totalorder %s13, 1
    %p182 = por %p180, %p181
    %p183 = scmp.ne.s32.totalorder %s175, %s178
    %p184 = scmp.eq.s32.totalorder %s13, 0
    %p185 = por %p183, %p184
    %p186 = scmp.ne.s32.totalorder %s175, %s178
    %p187 = scmp.eq.s32.totalorder %s18, 1
    %p188 = por %p186, %p187
    %p189 = scmp.ne.s32.totalorder %s178, %s179
    %p190 = scmp.eq.s32.totalorder %s18, 0
    %p191 = por %p189, %p190
    %p192 = scmp.ne.s32.totalorder %s178, %s179
    %p193 = scmp.eq.s32.totalorder %s19, 1
    %p194 = por %p192, %p193
    %p196 = scmp.ne.s32.totalorder %s179, %s195
    %p197 = scmp.eq.s32.totalorder %s19, 0
    %p198 = por %p196, %p197
    %p199 = scmp.le.s32.totalorder 1, %s13
    %p200 = scmp.lt.s32.totalorder %s13, 3
    %p201 = pnand %p199, %p200
    %p202 = pneg %p201
    // Predicated region
    $region9: #{mention_detection_head.1} parent=5 // pred_check
      _
    $region10: #{mention_detection_head.1} parent=5 // pred_check_branch
      %204 = sbr.rel (%p201) target = $region12
    $region11: #{mention_detection_head.1} parent=5 // pred_region
      %s205 = ssub.s32 %s13, 1
      // Predicated region
      $region13: #{mention_detection_head.1} parent=11 // pred_check
        %p206 = pneg %p60
      $region14: #{mention_detection_head.1} parent=11 // pred_check_branch
        %208 = sbr.rel (%p206) target = $region16
      $region15: #{mention_detection_head.1} parent=11 // pred_region
        _
      $region16: #{mention_detection_head.1} parent=11 // pred_fallthru
        _
      // Predicated region
      $region17: #{mention_detection_head.1} parent=11 // pred_check
        %p209 = pneg %p81
      $region18: #{mention_detection_head.1} parent=11 // pred_check_branch
        %211 = sbr.rel (%p209) target = $region20
      $region19: #{mention_detection_head.1} parent=11 // pred_region
        _
      $region20: #{mention_detection_head.1} parent=11 // pred_fallthru
        _
      // Predicated region
      $region21: #{mention_detection_head.1} parent=11 // pred_check
        %p212 = pneg %p102
      $region22: #{mention_detection_head.1} parent=11 // pred_check_branch
        %214 = sbr.rel (%p212) target = $region24
      $region23: #{mention_detection_head.1} parent=11 // pred_region
        _
      $region24: #{mention_detection_head.1} parent=11 // pred_fallthru
        _
      // Predicated region
      $region25: #{mention_detection_head.1} parent=11 // pred_check
        %p215 = pneg %p123
      $region26: #{mention_detection_head.1} parent=11 // pred_check_branch
        %217 = sbr.rel (%p215) target = $region28
      $region27: #{mention_detection_head.1} parent=11 // pred_region
        _
      $region28: #{mention_detection_head.1} parent=11 // pred_fallthru
        _
      // Predicated region
      $region29: #{mention_detection_head.1} parent=11 // pred_check
        %p218 = pneg %p144
      $region30: #{mention_detection_head.1} parent=11 // pred_check_branch
        %220 = sbr.rel (%p218) target = $region32
      $region31: #{mention_detection_head.1} parent=11 // pred_region
        _
      $region32: #{mention_detection_head.1} parent=11 // pred_fallthru
        _
      // Predicated region
      $region33: #{mention_detection_head.1} parent=11 // pred_check
        %p221 = pneg %p165
      $region34: #{mention_detection_head.1} parent=11 // pred_check_branch
        %223 = sbr.rel (%p221) target = $region36
      $region35: #{mention_detection_head.1} parent=11 // pred_region
        _
      $region36: #{mention_detection_head.1} parent=11 // pred_fallthru
        _
    $region12: #{mention_detection_head.1} parent=5 // pred_fallthru
      _
    %p224 = scmp.lt.s32.totalorder %s13, 2
    // Predicated region
    $region37: #{mention_detection_head.1} parent=5 // pred_check
      %p225 = pneg %p224
    $region38: #{mention_detection_head.1} parent=5 // pred_check_branch
      %227 = sbr.rel (%p225) target = $region40
    $region39: #{mention_detection_head.1} parent=5 // pred_region
      // Predicated region
      $region41: #{mention_detection_head.1} parent=39 // pred_check
        %p228 = pneg %p33
      $region42: #{mention_detection_head.1} parent=39 // pred_check_branch
        %230 = sbr.rel (%p228) target = $region44
      $region43: #{mention_detection_head.1} parent=39 // pred_region
        %p231 = scmp.lt.s32.totalorder %s13, 1
        %s232 = scalar_select %p231, %s13, 1
        %s233 = smul.addr %s232, 8
        %s234 = scalar_lea.vmem %s0, %s233
      $region44: #{mention_detection_head.1} parent=39 // pred_fallthru
        _
    $region40: #{mention_detection_head.1} parent=5 // pred_fallthru
      _
    %p235 = scmp.le.s32.totalorder 1, %s13
    %p236 = scmp.lt.s32.totalorder %s13, 3
    %p237 = pnand %p235, %p236
    %p238 = pneg %p237
    // Predicated region
    $region45: #{mention_detection_head.1} parent=5 // pred_check
      _
    $region46: #{mention_detection_head.1} parent=5 // pred_check_branch
      %240 = sbr.rel (%p237) target = $region48
    $region47: #{mention_detection_head.1} parent=5 // pred_region
      %s241 = ssub.s32 %s13, 1
      %p242 = scmp.lt.s32.totalorder %s18, 1
      %s243 = scalar_select %p242, %s18, 1
      %s244 = smul.addr %s243, 8
      %s245 = scalar_lea.vmem %s0, %s244
      %p246 = pneg %p39
      %p247 = pneg %p36
      %p248 = pneg %p60
      %p249 = pneg %p57
      %p250 = pneg %p81
      %p251 = pneg %p78
      %p252 = pneg %p102
      %p253 = pneg %p99
      %p254 = pneg %p123
      %p255 = pneg %p120
      %p256 = pneg %p144
      %p257 = pneg %p141
      %p258 = pneg %p165
      %p259 = pneg %p162
      %p260 = pneg %p191
      %p261 = pneg %p188
      %p262 = scmp.lt.s32.totalorder %s18, 1
      %s263 = scalar_select %p262, %s18, 1
      %s264 = smul.addr %s263, 8
      %s265 = scalar_lea.vmem %s7, %s264
      %p266 = scmp.lt.s32.totalorder %s18, 1
      %s267 = scalar_select %p266, %s18, 1
      %s268 = smul.addr %s267, 8
      %s269 = scalar_lea.vmem %s0, %s268
      %p270 = scmp.lt.s32.totalorder %s18, 1
      %s271 = scalar_select %p270, %s18, 1
      %s272 = smul.addr %s271, 8
      %s273 = scalar_lea.vmem %s7, %s272
      %v275 = vld [vmem:[%s269] sm:$0xff]
      %v276 = vpack.c.bf16 %v275, %v275
      %v277 = vld [vmem:[%s1] sm:$0xff]
      %v278 = vld [vmem:[%s1 + $0x8] sm:$0xff]
      %v279 = vld [vmem:[%s1 + $0x10] sm:$0xff]
      %v280 = vld [vmem:[%s1 + $0x18] sm:$0xff]
      %v281 = vld [vmem:[%s2] sm:$0x3]
      %v283 = vperm.slane %v281, 0
      %v284 = vperm.slane %v281, 1
      %v291 = vunpack.c.l.b16 %v277
      %v292 = vunpack.c.h.b16 %v277
      %v293 = vunpack.c.l.b16 %v278
      %v294 = vunpack.c.h.b16 %v278
      %v295 = vunpack.c.l.b16 %v279
      %v296 = vunpack.c.h.b16 %v279
      %v297 = vunpack.c.l.b16 %v280
      %v298 = vunpack.c.h.b16 %v280
      %v299 = vpack.c.b16 %v293, %v291
      %v300 = vpack.c.b16 %v294, %v292
      %v301 = vpack.c.b16 %v297, %v295
      %v302 = vpack.c.b16 %v298, %v296
      %vm307 = vcmask 261120
      %v309 = vsel %vm307, %v276, 0
      %311 = vmatpush.bf16.msra.mxu0 0
      %312 = vmatpush.bf16.msra.mxu0 0
      %313 = vmatpush.bf16.msra.mxu0 0
      %314 = vmatpush.bf16.msra.mxu0 0
      %315 = vmatpush.bf16.msra.mxu0 0
      %316 = vmatpush.bf16.msra.mxu0 0
      %317 = vmatpush.bf16.msra.mxu0 %v301
      %318 = vmatpush.bf16.msra.mxu0 %v299
      %319 = vmatmul.bf16.gmra.mxu0 %v309
      %v320 = vpop.f32.mrf.mxu0
      %v321 = vadd.f32 %v283, %v320
      %v322 = vpop.f32.mrf.mxu0
      %323 = vdwg.mxu0
      %324 = vmatpush.bf16.msra.mxu0 0
      %325 = vmatpush.bf16.msra.mxu0 0
      %326 = vmatpush.bf16.msra.mxu0 0
      %327 = vmatpush.bf16.msra.mxu0 0
      %328 = vmatpush.bf16.msra.mxu0 0
      %329 = vmatpush.bf16.msra.mxu0 0
      %330 = vmatpush.bf16.msra.mxu0 %v302
      %331 = vmatpush.bf16.msra.mxu0 %v300
      %332 = vmatmul.bf16.gmra.mxu0 %v309
      %v333 = vpop.f32.mrf.mxu0
      %v334 = vadd.f32 %v284, %v333
      %v335 = vpop.f32.mrf.mxu0
      %336 = vdwg.mxu0
      %v337 = vmax.f32 %v321, 0.0
      %v338 = vmax.f32 %v334, 0.0
      %v339 = vpack.c.bf16 %v337, %v337
      %v340 = vpack.c.bf16 %v338, %v338
      %v341 = vld [vmem:[%s3] sm:$0xff]
      %v342 = vld [vmem:[%s3 + $0x8] sm:$0xff]
      %v343 = vld [vmem:[%s3 + $0x10] sm:$0xff]
      %v344 = vld [vmem:[%s3 + $0x18] sm:$0xff]
      %v345 = vld [vmem:[%s3 + $0x20] sm:$0xff]
      %v346 = vld [vmem:[%s3 + $0x28] sm:$0xff]
      %v347 = vld [vmem:[%s3 + $0x30] sm:$0xff]
      %v348 = vld [vmem:[%s3 + $0x38] sm:$0xff]
      %v349 = vld [vmem:[%s3 + $0x40] sm:$0xff]
      %v350 = vld [vmem:[%s3 + $0x48] sm:$0xff]
      %v351 = vld [vmem:[%s3 + $0x50] sm:$0xff]
      %v352 = vld [vmem:[%s3 + $0x58] sm:$0xff]
      %v353 = vld [vmem:[%s3 + $0x60] sm:$0xff]
      %v354 = vld [vmem:[%s3 + $0x68] sm:$0xff]
      %v355 = vld [vmem:[%s3 + $0x70] sm:$0xff]
      %v356 = vld [vmem:[%s3 + $0x78] sm:$0xff]
      %v357 = vld [vmem:[%s3 + $0x80] sm:$0xff]
      %v358 = vld [vmem:[%s3 + $0x88] sm:$0xff]
      %v359 = vld [vmem:[%s3 + $0x90] sm:$0xff]
      %v360 = vld [vmem:[%s3 + $0x98] sm:$0xff]
      %v361 = vld [vmem:[%s3 + $0xa0] sm:$0xff]
      %v362 = vld [vmem:[%s3 + $0xa8] sm:$0xff]
      %v363 = vld [vmem:[%s3 + $0xb0] sm:$0xff]
      %v364 = vld [vmem:[%s3 + $0xb8] sm:$0xff]
      %v365 = vld [vmem:[%s3 + $0xc0] sm:$0xff]
      %v366 = vld [vmem:[%s3 + $0xc8] sm:$0xff]
      %v367 = vld [vmem:[%s3 + $0xd0] sm:$0xff]
      %v368 = vld [vmem:[%s3 + $0xd8] sm:$0xff]
      %v369 = vld [vmem:[%s3 + $0xe0] sm:$0xff]
      %v370 = vld [vmem:[%s3 + $0xe8] sm:$0xff]
      %v371 = vld [vmem:[%s3 + $0xf0] sm:$0xff]
      %v372 = vld [vmem:[%s3 + $0xf8] sm:$0xff]
      %v373 = vld [vmem:[%s4] sm:$0x3]
      %v375 = vperm.slane %v373, 0
      %v376 = vperm.slane %v373, 1
      %v411 = vunpack.c.l.b16 %v341
      %v412 = vunpack.c.h.b16 %v341
      %v413 = vunpack.c.l.b16 %v342
      %v414 = vunpack.c.h.b16 %v342
      %v415 = vunpack.c.l.b16 %v343
      %v416 = vunpack.c.h.b16 %v343
      %v417 = vunpack.c.l.b16 %v344
      %v418 = vunpack.c.h.b16 %v344
      %v419 = vunpack.c.l.b16 %v345
      %v420 = vunpack.c.h.b16 %v345
      %v421 = vunpack.c.l.b16 %v346
      %v422 = vunpack.c.h.b16 %v346
      %v423 = vunpack.c.l.b16 %v347
      %v424 = vunpack.c.h.b16 %v347
      %v425 = vunpack.c.l.b16 %v348
      %v426 = vunpack.c.h.b16 %v348
      %v427 = vunpack.c.l.b16 %v349
      %v428 = vunpack.c.h.b16 %v349
      %v429 = vunpack.c.l.b16 %v350
      %v430 = vunpack.c.h.b16 %v350
      %v431 = vunpack.c.l.b16 %v351
      %v432 = vunpack.c.h.b16 %v351
      %v433 = vunpack.c.l.b16 %v352
      %v434 = vunpack.c.h.b16 %v352
      %v435 = vunpack.c.l.b16 %v353
      %v436 = vunpack.c.h.b16 %v353
      %v437 = vunpack.c.l.b16 %v354
      %v438 = vunpack.c.h.b16 %v354
      %v439 = vunpack.c.l.b16 %v355
      %v440 = vunpack.c.h.b16 %v355
      %v441 = vunpack.c.l.b16 %v356
      %v442 = vunpack.c.h.b16 %v356
      %v443 = vunpack.c.l.b16 %v357
      %v444 = vunpack.c.h.b16 %v357
      %v445 = vunpack.c.l.b16 %v358
      %v446 = vunpack.c.h.b16 %v358
      %v447 = vunpack.c.l.b16 %v359
      %v448 = vunpack.c.h.b16 %v359
      %v449 = vunpack.c.l.b16 %v360
      %v450 = vunpack.c.h.b16 %v360
      %v451 = vunpack.c.l.b16 %v361
      %v452 = vunpack.c.h.b16 %v361
      %v453 = vunpack.c.l.b16 %v362
      %v454 = vunpack.c.h.b16 %v362
      %v455 = vunpack.c.l.b16 %v363
      %v456 = vunpack.c.h.b16 %v363
      %v457 = vunpack.c.l.b16 %v364
      %v458 = vunpack.c.h.b16 %v364
      %v459 = vunpack.c.l.b16 %v365
      %v460 = vunpack.c.h.b16 %v365
      %v461 = vunpack.c.l.b16 %v366
      %v462 = vunpack.c.h.b16 %v366
      %v463 = vunpack.c.l.b16 %v367
      %v464 = vunpack.c.h.b16 %v367
      %v465 = vunpack.c.l.b16 %v368
      %v466 = vunpack.c.h.b16 %v368
      %v467 = vunpack.c.l.b16 %v369
      %v468 = vunpack.c.h.b16 %v369
      %v469 = vunpack.c.l.b16 %v370
      %v470 = vunpack.c.h.b16 %v370
      %v471 = vunpack.c.l.b16 %v371
      %v472 = vunpack.c.h.b16 %v371
      %v473 = vunpack.c.l.b16 %v372
      %v474 = vunpack.c.h.b16 %v372
      %v475 = vpack.c.b16 %v413, %v411
      %v476 = vpack.c.b16 %v414, %v412
      %v477 = vpack.c.b16 %v417, %v415
      %v478 = vpack.c.b16 %v418, %v416
      %v479 = vpack.c.b16 %v421, %v419
      %v480 = vpack.c.b16 %v422, %v420
      %v481 = vpack.c.b16 %v425, %v423
      %v482 = vpack.c.b16 %v426, %v424
      %v483 = vpack.c.b16 %v429, %v427
      %v484 = vpack.c.b16 %v430, %v428
      %v485 = vpack.c.b16 %v433, %v431
      %v486 = vpack.c.b16 %v434, %v432
      %v487 = vpack.c.b16 %v437, %v435
      %v488 = vpack.c.b16 %v438, %v436
      %v489 = vpack.c.b16 %v441, %v439
      %v490 = vpack.c.b16 %v442, %v440
      %v491 = vpack.c.b16 %v445, %v443
      %v492 = vpack.c.b16 %v446, %v444
      %v493 = vpack.c.b16 %v449, %v447
      %v494 = vpack.c.b16 %v450, %v448
      %v495 = vpack.c.b16 %v453, %v451
      %v496 = vpack.c.b16 %v454, %v452
      %v497 = vpack.c.b16 %v457, %v455
      %v498 = vpack.c.b16 %v458, %v456
      %v499 = vpack.c.b16 %v461, %v459
      %v500 = vpack.c.b16 %v462, %v460
      %v501 = vpack.c.b16 %v465, %v463
      %v502 = vpack.c.b16 %v466, %v464
      %v503 = vpack.c.b16 %v469, %v467
      %v504 = vpack.c.b16 %v470, %v468
      %v505 = vpack.c.b16 %v473, %v471
      %v506 = vpack.c.b16 %v474, %v472
      %539 = vmatpush.bf16.msra.mxu0 %v489
      %540 = vmatpush.bf16.msra.mxu0 %v487
      %541 = vmatpush.bf16.msra.mxu0 %v485
      %542 = vmatpush.bf16.msra.mxu0 %v483
      %543 = vmatpush.bf16.msra.mxu0 %v481
      %544 = vmatpush.bf16.msra.mxu0 %v479
      %545 = vmatpush.bf16.msra.mxu0 %v477
      %546 = vmatpush.bf16.msra.mxu0 %v475
      %547 = vmatmul.bf16.gmra.mxu0 %v339
      %v548 = vpop.f32.mrf.mxu0
      %v549 = vadd.f32 %v375, %v548
      %v550 = vpop.f32.mrf.mxu0
      %551 = vdwg.mxu0
      %552 = vmatpush.bf16.msra.mxu0 %v505
      %553 = vmatpush.bf16.msra.mxu0 %v503
      %554 = vmatpush.bf16.msra.mxu0 %v501
      %555 = vmatpush.bf16.msra.mxu0 %v499
      %556 = vmatpush.bf16.msra.mxu0 %v497
      %557 = vmatpush.bf16.msra.mxu0 %v495
      %558 = vmatpush.bf16.msra.mxu0 %v493
      %559 = vmatpush.bf16.msra.mxu0 %v491
      %560 = vmatmul.bf16.gmra.mxu0 %v340
      %v561 = vpop.f32.mrf.mxu0
      %v562 = vadd.f32 %v549, %v561
      %v563 = vpop.f32.mrf.mxu0
      %564 = vdwg.mxu0
      %565 = vmatpush.bf16.msra.mxu0 %v490
      %566 = vmatpush.bf16.msra.mxu0 %v488
      %567 = vmatpush.bf16.msra.mxu0 %v486
      %568 = vmatpush.bf16.msra.mxu0 %v484
      %569 = vmatpush.bf16.msra.mxu0 %v482
      %570 = vmatpush.bf16.msra.mxu0 %v480
      %571 = vmatpush.bf16.msra.mxu0 %v478
      %572 = vmatpush.bf16.msra.mxu0 %v476
      %573 = vmatmul.bf16.gmra.mxu0 %v339
      %v574 = vpop.f32.mrf.mxu0
      %v575 = vadd.f32 %v376, %v574
      %v576 = vpop.f32.mrf.mxu0
      %577 = vdwg.mxu0
      %578 = vmatpush.bf16.msra.mxu0 %v506
      %579 = vmatpush.bf16.msra.mxu0 %v504
      %580 = vmatpush.bf16.msra.mxu0 %v502
      %581 = vmatpush.bf16.msra.mxu0 %v500
      %582 = vmatpush.bf16.msra.mxu0 %v498
      %583 = vmatpush.bf16.msra.mxu0 %v496
      %584 = vmatpush.bf16.msra.mxu0 %v494
      %585 = vmatpush.bf16.msra.mxu0 %v492
      %586 = vmatmul.bf16.gmra.mxu0 %v340
      %v587 = vpop.f32.mrf.mxu0
      %v588 = vadd.f32 %v575, %v587
      %v589 = vpop.f32.mrf.mxu0
      %590 = vdwg.mxu0
      %v591 = vmax.f32 %v562, 0.0
      %v592 = vmax.f32 %v588, 0.0
      %v593 = vpack.c.bf16 %v591, %v591
      %v594 = vpack.c.bf16 %v592, %v592
      %v595 = vld [vmem:[%s5] sm:$0xf]
      %v596 = vld [vmem:[%s5 + $0x4] sm:$0xf]
      %v597 = vld [vmem:[%s5 + $0x8] sm:$0xf]
      %v598 = vld [vmem:[%s5 + $0xc] sm:$0xf]
      %v599 = vld [vmem:[%s5 + $0x10] sm:$0xf]
      %v600 = vld [vmem:[%s5 + $0x14] sm:$0xf]
      %v601 = vld [vmem:[%s5 + $0x18] sm:$0xf]
      %v602 = vld [vmem:[%s5 + $0x1c] sm:$0xf]
      %v603 = vld [vmem:[%s5 + $0x20] sm:$0xf]
      %v604 = vld [vmem:[%s5 + $0x24] sm:$0xf]
      %v605 = vld [vmem:[%s5 + $0x28] sm:$0xf]
      %v606 = vld [vmem:[%s5 + $0x2c] sm:$0xf]
      %v607 = vld [vmem:[%s5 + $0x30] sm:$0xf]
      %v608 = vld [vmem:[%s5 + $0x34] sm:$0xf]
      %v609 = vld [vmem:[%s5 + $0x38] sm:$0xf]
      %v610 = vld [vmem:[%s5 + $0x3c] sm:$0xf]
      %v611 = vld [vmem:[%s5 + $0x40] sm:$0xf]
      %v612 = vld [vmem:[%s5 + $0x44] sm:$0xf]
      %v613 = vld [vmem:[%s5 + $0x48] sm:$0xf]
      %v614 = vld [vmem:[%s5 + $0x4c] sm:$0xf]
      %v615 = vld [vmem:[%s5 + $0x50] sm:$0xf]
      %v616 = vld [vmem:[%s5 + $0x54] sm:$0xf]
      %v617 = vld [vmem:[%s5 + $0x58] sm:$0xf]
      %v618 = vld [vmem:[%s5 + $0x5c] sm:$0xf]
      %v619 = vld [vmem:[%s5 + $0x60] sm:$0xf]
      %v620 = vld [vmem:[%s5 + $0x64] sm:$0xf]
      %v621 = vld [vmem:[%s5 + $0x68] sm:$0xf]
      %v622 = vld [vmem:[%s5 + $0x6c] sm:$0xf]
      %v623 = vld [vmem:[%s5 + $0x70] sm:$0xf]
      %v624 = vld [vmem:[%s5 + $0x74] sm:$0xf]
      %v625 = vld [vmem:[%s5 + $0x78] sm:$0xf]
      %v626 = vld [vmem:[%s5 + $0x7c] sm:$0xf]
      %v627 = vld [vmem:[%s6] sm:$0x1]
      %v629 = vperm.slane %v627, 0
      %v663 = vunpack.c.l.b16 %v595
      %v664 = vunpack.c.l.b16 %v596
      %v665 = vunpack.c.l.b16 %v597
      %v666 = vunpack.c.l.b16 %v598
      %v667 = vunpack.c.l.b16 %v599
      %v668 = vunpack.c.l.b16 %v600
      %v669 = vunpack.c.l.b16 %v601
      %v670 = vunpack.c.l.b16 %v602
      %v671 = vunpack.c.l.b16 %v603
      %v672 = vunpack.c.l.b16 %v604
      %v673 = vunpack.c.l.b16 %v605
      %v674 = vunpack.c.l.b16 %v606
      %v675 = vunpack.c.l.b16 %v607
      %v676 = vunpack.c.l.b16 %v608
      %v677 = vunpack.c.l.b16 %v609
      %v678 = vunpack.c.l.b16 %v610
      %v679 = vunpack.c.l.b16 %v611
      %v680 = vunpack.c.l.b16 %v612
      %v681 = vunpack.c.l.b16 %v613
      %v682 = vunpack.c.l.b16 %v614
      %v683 = vunpack.c.l.b16 %v615
      %v684 = vunpack.c.l.b16 %v616
      %v685 = vunpack.c.l.b16 %v617
      %v686 = vunpack.c.l.b16 %v618
      %v687 = vunpack.c.l.b16 %v619
      %v688 = vunpack.c.l.b16 %v620
      %v689 = vunpack.c.l.b16 %v621
      %v690 = vunpack.c.l.b16 %v622
      %v691 = vunpack.c.l.b16 %v623
      %v692 = vunpack.c.l.b16 %v624
      %v693 = vunpack.c.l.b16 %v625
      %v694 = vunpack.c.l.b16 %v626
      %v695 = vpack.c.b16 %v664, %v663
      %v696 = vpack.c.b16 %v666, %v665
      %v697 = vpack.c.b16 %v668, %v667
      %v698 = vpack.c.b16 %v670, %v669
      %v699 = vpack.c.b16 %v672, %v671
      %v700 = vpack.c.b16 %v674, %v673
      %v701 = vpack.c.b16 %v676, %v675
      %v702 = vpack.c.b16 %v678, %v677
      %v703 = vpack.c.b16 %v680, %v679
      %v704 = vpack.c.b16 %v682, %v681
      %v705 = vpack.c.b16 %v684, %v683
      %v706 = vpack.c.b16 %v686, %v685
      %v707 = vpack.c.b16 %v688, %v687
      %v708 = vpack.c.b16 %v690, %v689
      %v709 = vpack.c.b16 %v692, %v691
      %v710 = vpack.c.b16 %v694, %v693
      %727 = vmatpush.bf16.msra.mxu0 %v702
      %728 = vmatpush.bf16.msra.mxu0 %v701
      %729 = vmatpush.bf16.msra.mxu0 %v700
      %730 = vmatpush.bf16.msra.mxu0 %v699
      %731 = vmatpush.bf16.msra.mxu0 %v698
      %732 = vmatpush.bf16.msra.mxu0 %v697
      %733 = vmatpush.bf16.msra.mxu0 %v696
      %734 = vmatpush.bf16.msra.mxu0 %v695
      %735 = vmatmul.bf16.gmra.mxu0 %v593
      %v736 = vpop.f32.mrf.mxu0
      %v737 = vadd.f32 %v629, %v736
      %v738 = vpop.f32.mrf.mxu0
      %739 = vdwg.mxu0
      %740 = vmatpush.bf16.msra.mxu0 %v710
      %741 = vmatpush.bf16.msra.mxu0 %v709
      %742 = vmatpush.bf16.msra.mxu0 %v708
      %743 = vmatpush.bf16.msra.mxu0 %v707
      %744 = vmatpush.bf16.msra.mxu0 %v706
      %745 = vmatpush.bf16.msra.mxu0 %v705
      %746 = vmatpush.bf16.msra.mxu0 %v704
      %747 = vmatpush.bf16.msra.mxu0 %v703
      %748 = vmatmul.bf16.gmra.mxu0 %v594
      %v749 = vpop.f32.mrf.mxu0
      %v750 = vadd.f32 %v737, %v749
      %v751 = vpop.f32.mrf.mxu0
      %752 = vdwg.mxu0
      %v753 = vmax.f32 %v750, 0.0
      %v754 = vlaneseq
      %v755 = vand.u32 %v754, 127
      %vm756 = vcmp.lt.s32.totalorder %v755, 3
      %v757 = vsel %vm756, %v753, -inf
      %758 = vmax.xlane.f32.xlu0 %v757
      %v759 = vpop.xlane.xlu0 %758
      %v760 = vsub.f32 %v757, %v759
      %v761 = vmul.f32 %v760, 1.442695
      %v762 = vpow.pop %v761
      %763 = vadd.xlane.f32.xlu0 %v762
      %v764 = vpop.xlane.xlu0 %763
      %v765 = vlog2.pop %v764
      %v766 = vmul.f32 %v765, 0.6931472
      %v767 = vsub.f32 %v760, %v766
      %vm768 = vcmask 64512
      %769 = vst.msk [vmem:[%s273] sm:$0xff] %vm768, %v767
      %p770 = scmp.lt.s32.totalorder %s18, 1
      %s771 = scalar_select %p770, %s18, 1
      %s772 = smul.addr %s771, 8
      %s773 = scalar_lea.vmem %s7, %s772
      // Predicated region
      $region49: #{mention_detection_head.1} parent=47 // pred_check
        %p774 = pneg %p188
      $region50: #{mention_detection_head.1} parent=47 // pred_check_branch
        %776 = sbr.rel (%p774) target = $region52
      $region51: #{mention_detection_head.1} parent=47 // pred_region
        _
      $region52: #{mention_detection_head.1} parent=47 // pred_fallthru
        _
    $region48: #{mention_detection_head.1} parent=5 // pred_fallthru
      _
    %p777 = scmp.le.s32.totalorder 2, %s13
    // Predicated region
    $region53: #{mention_detection_head.1} parent=5 // pred_check
      %p778 = pneg %p777
    $region54: #{mention_detection_head.1} parent=5 // pred_check_branch
      %780 = sbr.rel (%p778) target = $region56
    $region55: #{mention_detection_head.1} parent=5 // pred_region
      %s781 = ssub.s32 %s13, 2
      // Predicated region
      $region57: #{mention_detection_head.1} parent=55 // pred_check
        %p782 = pneg %p194
      $region58: #{mention_detection_head.1} parent=55 // pred_check_branch
        %784 = sbr.rel (%p782) target = $region60
      $region59: #{mention_detection_head.1} parent=55 // pred_region
        %p785 = scmp.lt.s32.totalorder %s19, 1
        %s786 = scalar_select %p785, %s19, 1
        %s787 = smul.addr %s786, 8
        %s788 = scalar_lea.vmem %s7, %s787
      $region60: #{mention_detection_head.1} parent=55 // pred_fallthru
        _
    $region56: #{mention_detection_head.1} parent=5 // pred_fallthru
      _
  $region6: #{mention_detection_head.1} parent=0 // loop_footer
    %s17 = sadd.s32 1, %s13
  $region7: #{mention_detection_head.1} parent=0 // loop_footer_branch
    %12 = sbr.rel target = $region3
  $region8: #{mention_detection_head.1} parent=0 // loop_exit
    _

</llo_original>
